<compile_context>
chip_gen: v7x
topology: tpu7x:2x2x1
jax: 0.10.0
libtpu: 0.0.40
codegen_flags: <defaults>
</compile_context>

<pallas_src>
import functools

import jax
import jax.numpy as jnp
from jax.experimental import pallas as pl
from jax.experimental.pallas import tpu as pltpu


_LIPSWISH_SCALE = 0.909
_MAX_BATCH_BLOCK = 1024  # rows per grid step for large batches (multiple of 128)


def _round_up(x, m):
    return ((x + m - 1) // m) * m


# ----------------------------------------------------------------------------
# Fused MLP kernel: every Linear + LipSwish + final Tanh in one kernel body.
#   refs = (t_ref [SMEM (1,1)], h_ref (BLK, hidden), w_ref (L, P, P),
#           b_ref (L+1, P), o_ref (BLK, dout))
#   w_ref[i] : layer-i weight pre-transposed to (in, out), zero-padded to (P, P);
#              for i == 0 it holds only the h-columns of the first Linear.
#   b_ref[i] : layer-i bias zero-padded to P.
#   b_ref[L] : the time-column row of the first Linear's (transposed) weight, so
#              the folded concat is   layer0 = h @ w_ref[0][:hidden] + b_ref[0]
#                                              + t * b_ref[L].
# ----------------------------------------------------------------------------
def _fused_mlp_kernel(t_ref, h_ref, w_ref, b_ref, o_ref, *,
                      num_linear, hidden, dout, tanh):
    t = t_ref[0, 0]
    x = h_ref[...].astype(jnp.float32)                     # (BLK, hidden)

    # Layer 0 with the time-concat folded in (small-K matmul on the h part).
    w0 = w_ref[0]                                          # (P, P) resident load
    y = jnp.dot(x, w0[:hidden, :], preferred_element_type=jnp.float32)
    y = y + b_ref[0:1, :] + t * b_ref[num_linear:num_linear + 1, :]
    y = _LIPSWISH_SCALE * y * jax.nn.sigmoid(y)            # LipSwish

    # Remaining layers: uniform (BLK, P) @ (P, P) matmuls, zero padding is inert.
    for i in range(1, num_linear):
        y = jnp.dot(y, w_ref[i], preferred_element_type=jnp.float32)
        y = y + b_ref[i:i + 1, :]
        if i < num_linear - 1:
            y = _LIPSWISH_SCALE * y * jax.nn.sigmoid(y)    # LipSwish

    y = y[:, :dout]                                        # drop zero-padded cols
    if tanh:
        y = jnp.tanh(y)
    o_ref[...] = y.astype(o_ref.dtype)


def fused_mlp(t, h, w_stack, b_stack, *, dout, tanh):
    """Whole MLP in a single pallas_call.  h: (B, hidden)."""
    B, hidden = h.shape
    num_linear = w_stack.shape[0]
    t_arr = jnp.reshape(t, (1, 1)).astype(jnp.float32)
    kernel = functools.partial(
        _fused_mlp_kernel, num_linear=num_linear, hidden=hidden,
        dout=dout, tanh=tanh)
    smem = pltpu.MemorySpace.SMEM
    vmem = pltpu.MemorySpace.VMEM

    if B <= _MAX_BATCH_BLOCK:
        # Small batch: no grid, no pipelining machinery; whole problem in VMEM.
        return pl.pallas_call(
            kernel,
            out_shape=jax.ShapeDtypeStruct((B, dout), h.dtype),
            in_specs=[pl.BlockSpec(memory_space=smem),     # t scalar
                      pl.BlockSpec(memory_space=vmem),     # h
                      pl.BlockSpec(memory_space=vmem),     # stacked weights
                      pl.BlockSpec(memory_space=vmem)],    # stacked biases
            out_specs=pl.BlockSpec(memory_space=vmem),
        )(t_arr, h, w_stack, b_stack)

    # Large batch: tile the batch axis.  Big blocks amortize the ~0.35us/step
    # pipeline overhead; cap so there are always >= 2 blocks (v7x: 2 TCs share
    # the "parallel" axis).  No wrapper pad/slice: cdiv grid + masked tail
    # writeback handled by Pallas.  Weights/biases resident via constant maps.
    blk = min(_MAX_BATCH_BLOCK, _round_up(-(-B // 2), 128))
    n_blocks = pl.cdiv(B, blk)
    return pl.pallas_call(
        kernel,
        out_shape=jax.ShapeDtypeStruct((B, dout), h.dtype),
        grid=(n_blocks,),
        in_specs=[
            pl.BlockSpec(memory_space=smem),                    # t scalar
            pl.BlockSpec((blk, hidden), lambda i: (i, 0)),      # h tile
            pl.BlockSpec(w_stack.shape, lambda i: (0, 0, 0)),   # resident weights
            pl.BlockSpec(b_stack.shape, lambda i: (0, 0)),      # resident biases
        ],
        out_specs=pl.BlockSpec((blk, dout), lambda i: (i, 0)),
        compiler_params=pltpu.CompilerParams(
            dimension_semantics=("parallel",)),
    )(t_arr, h, w_stack, b_stack)


# ----------------------------------------------------------------------------
# Parameter init (mirrors torch.nn.Linear) and one-time preparation.
# ----------------------------------------------------------------------------
def init_mlp_params(key, in_size, out_size, mlp_size, num_layers):
    """List of (W, b) with W stored PyTorch-style as (out_features, in_features)."""
    sizes = [(in_size, mlp_size)]
    for _ in range(num_layers - 1):
        sizes.append((mlp_size, mlp_size))
    sizes.append((mlp_size, out_size))

    params = []
    for fan_in, fan_out in sizes:
        key, kw, kb = jax.random.split(key, 3)
        bound = 1.0 / float(fan_in) ** 0.5
        w = jax.random.uniform(kw, (fan_out, fan_in),
                               minval=-bound, maxval=bound, dtype=jnp.float32)
        b = jax.random.uniform(kb, (fan_out,),
                               minval=-bound, maxval=bound, dtype=jnp.float32)
        params.append((w, b))
    return params


def prepare_mlp_params(params, hidden_size):
    """One-time host prep: transpose to (in, out), zero-pad to a uniform width P,
    stack all weights into (L, P, P) and all biases plus the layer-0 time row
    into (L+1, P)."""
    L = len(params)
    out_dims = [int(w.shape[0]) for (w, _) in params]
    P = max([hidden_size] + out_dims)
    w_stack = jnp.zeros((L, P, P), jnp.float32)
    b_stack = jnp.zeros((L + 1, P), jnp.float32)
    for i, (w, b) in enumerate(params):
        wt = jnp.asarray(w, jnp.float32).T                       # (in_i, out_i)
        if i == 0:
            b_stack = b_stack.at[L, :wt.shape[1]].set(wt[0, :])  # time row
            wt = wt[1:, :]                                       # h rows only
        w_stack = w_stack.at[i, :wt.shape[0], :wt.shape[1]].set(wt)
        b_stack = b_stack.at[i, :b.shape[0]].set(jnp.asarray(b, jnp.float32))
    return w_stack, b_stack


# ----------------------------------------------------------------------------
# DiscriminatorFunc forward:  (t, h) -> (B, hidden, 1 + data_size)
# ----------------------------------------------------------------------------
@functools.partial(jax.jit, static_argnames=("hidden_size", "data_size", "tanh"))
def discriminator_forward(t, h, w_stack, b_stack, *, hidden_size, data_size,
                          tanh=True):
    dout = hidden_size * (1 + data_size)
    out = fused_mlp(t, h, w_stack, b_stack, dout=dout, tanh=tanh)
    return out.reshape(h.shape[0], hidden_size, 1 + data_size)


def discriminator_reference(t, h, params, hidden_size, data_size, tanh=True):
    """Pure-JAX reference (matches the PyTorch module)."""
    batch = h.shape[0]
    t_col = jnp.broadcast_to(jnp.reshape(t, (1, 1)), (batch, 1)).astype(h.dtype)
    x = jnp.concatenate([t_col, h], axis=1)
    n = len(params)
    for i, (w, b) in enumerate(params):
        x = x @ w.T + b
        if i < n - 1:
            x = _LIPSWISH_SCALE * x * jax.nn.sigmoid(x)
        elif tanh:
            x = jnp.tanh(x)
    return x.reshape(batch, hidden_size, 1 + data_size)


if __name__ == "__main__":
    # DiscriminatorFunc(data_size=3, hidden_size=4, mlp_size=32, num_layers=3)
    data_size, hidden_size, mlp_size, num_layers = 3, 4, 32, 3
    in_size = 1 + hidden_size                       # 5
    out_size = hidden_size * (1 + data_size)        # 16

    key = jax.random.PRNGKey(0)
    key, kt, kh_small, kh_large = jax.random.split(key, 4)
    params = init_mlp_params(key, in_size, out_size, mlp_size, num_layers)
    w_stack, b_stack = prepare_mlp_params(params, hidden_size)   # one-time prep
    t = jax.random.uniform(kt, (), dtype=jnp.float32)

    # Exercise both paths: small no-grid batch and a large, non-divisible batch
    # (tests the cdiv grid + masked tail writeback).
    for batch, kk in ((8, kh_small), (2500, kh_large)):
        h = jax.random.normal(kk, (batch, hidden_size), dtype=jnp.float32)
        out = discriminator_forward(
            t, h, w_stack, b_stack,
            hidden_size=hidden_size, data_size=data_size, tanh=True)
        out = jax.block_until_ready(out)
        ref = discriminator_reference(t, h, params, hidden_size, data_size, True)
        assert out.shape == (batch, hidden_size, 1 + data_size)
        assert jnp.allclose(out, ref, atol=1e-5, rtol=1e-5), \
            f"mismatch vs reference at batch={batch}"

    print("KERNEL_OK")
</pallas_src>

<mosaic_0001>
module attributes {stable_mosaic.version = 11 : i64} {
  func.func @_fused_mlp_kernel(%arg0: memref<1x1xf32, #tpu.memory_space<smem>>, %arg1: memref<8x4xf32, #tpu.memory_space<vmem>>, %arg2: memref<4x32x32xf32, #tpu.memory_space<vmem>>, %arg3: memref<5x32xf32, #tpu.memory_space<vmem>>, %arg4: memref<8x16xf32, #tpu.memory_space<vmem>>) attributes {dimension_semantics = [], scalar_prefetch = 0 : i64, scratch_operands = 0 : i64, tpu.core_type = #tpu.core_type<tc>} {
    %c0 = arith.constant 0 : index
    %c0_0 = arith.constant 0 : index
    %0 = memref.load %arg0[%c0, %c0_0] : memref<1x1xf32, #tpu.memory_space<smem>>
    %c0_1 = arith.constant 0 : index
    %c0_2 = arith.constant 0 : index
    %1 = vector.load %arg1[%c0_1, %c0_2] : memref<8x4xf32, #tpu.memory_space<vmem>>, vector<8x4xf32>
    %c0_3 = arith.constant 0 : index
    %c0_4 = arith.constant 0 : index
    %c0_5 = arith.constant 0 : index
    %2 = vector.load %arg2[%c0_3, %c0_4, %c0_5] : memref<4x32x32xf32, #tpu.memory_space<vmem>>, vector<1x32x32xf32>
    %3 = vector.shape_cast %2 : vector<1x32x32xf32> to vector<32x32xf32>
    %4 = vector.extract_strided_slice %3 {offsets = [0, 0], sizes = [4, 32], strides = [1, 1]} : vector<32x32xf32> to vector<4x32xf32>
    %cst = arith.constant dense<0.000000e+00> : vector<8x32xf32>
    %5 = tpu.matmul %1, %4, %cst {dimension_numbers = #tpu.dot_dimension_numbers<[1], [0], [0], [1], [0, 0, 1, 1], [], []>} : vector<8x4xf32>, vector<4x32xf32>, vector<8x32xf32> -> vector<8x32xf32>
    %c0_6 = arith.constant 0 : index
    %c0_7 = arith.constant 0 : index
    %6 = vector.load %arg3[%c0_6, %c0_7] : memref<5x32xf32, #tpu.memory_space<vmem>>, vector<1x32xf32>
    %7 = vector.broadcast %6 : vector<1x32xf32> to vector<8x32xf32>
    %8 = arith.addf %5, %7 : vector<8x32xf32>
    %c4 = arith.constant 4 : index
    %c0_8 = arith.constant 0 : index
    %9 = vector.load %arg3[%c4, %c0_8] : memref<5x32xf32, #tpu.memory_space<vmem>>, vector<1x32xf32>
    %10 = vector.broadcast %0 : f32 to vector<1x32xf32>
    %11 = arith.mulf %10, %9 : vector<1x32xf32>
    %12 = vector.broadcast %11 : vector<1x32xf32> to vector<8x32xf32>
    %13 = arith.addf %8, %12 : vector<8x32xf32>
    %cst_9 = arith.constant 0.908999979 : f32
    %14 = vector.broadcast %cst_9 : f32 to vector<8x32xf32>
    %15 = arith.mulf %14, %13 : vector<8x32xf32>
    %16 = arith.negf %13 : vector<8x32xf32>
    %17 = math.exp %16 : vector<8x32xf32>
    %cst_10 = arith.constant 1.000000e+00 : f32
    %18 = vector.broadcast %cst_10 : f32 to vector<8x32xf32>
    %19 = arith.addf %18, %17 : vector<8x32xf32>
    %20 = arith.divf %18, %19 : vector<8x32xf32>
    %21 = arith.mulf %15, %20 : vector<8x32xf32>
    %c1 = arith.constant 1 : index
    %c0_11 = arith.constant 0 : index
    %c0_12 = arith.constant 0 : index
    %22 = vector.load %arg2[%c1, %c0_11, %c0_12] : memref<4x32x32xf32, #tpu.memory_space<vmem>>, vector<1x32x32xf32>
    %23 = vector.shape_cast %22 : vector<1x32x32xf32> to vector<32x32xf32>
    %cst_13 = arith.constant dense<0.000000e+00> : vector<8x32xf32>
    %24 = tpu.matmul %21, %23, %cst_13 {dimension_numbers = #tpu.dot_dimension_numbers<[1], [0], [0], [1], [0, 0, 1, 1], [], []>} : vector<8x32xf32>, vector<32x32xf32>, vector<8x32xf32> -> vector<8x32xf32>
    %c1_14 = arith.constant 1 : index
    %c0_15 = arith.constant 0 : index
    %25 = vector.load %arg3[%c1_14, %c0_15] : memref<5x32xf32, #tpu.memory_space<vmem>>, vector<1x32xf32>
    %26 = vector.broadcast %25 : vector<1x32xf32> to vector<8x32xf32>
    %27 = arith.addf %24, %26 : vector<8x32xf32>
    %cst_16 = arith.constant 0.908999979 : f32
    %28 = vector.broadcast %cst_16 : f32 to vector<8x32xf32>
    %29 = arith.mulf %28, %27 : vector<8x32xf32>
    %30 = arith.negf %27 : vector<8x32xf32>
    %31 = math.exp %30 : vector<8x32xf32>
    %cst_17 = arith.constant 1.000000e+00 : f32
    %32 = vector.broadcast %cst_17 : f32 to vector<8x32xf32>
    %33 = arith.addf %32, %31 : vector<8x32xf32>
    %34 = arith.divf %32, %33 : vector<8x32xf32>
    %35 = arith.mulf %29, %34 : vector<8x32xf32>
    %c2 = arith.constant 2 : index
    %c0_18 = arith.constant 0 : index
    %c0_19 = arith.constant 0 : index
    %36 = vector.load %arg2[%c2, %c0_18, %c0_19] : memref<4x32x32xf32, #tpu.memory_space<vmem>>, vector<1x32x32xf32>
    %37 = vector.shape_cast %36 : vector<1x32x32xf32> to vector<32x32xf32>
    %cst_20 = arith.constant dense<0.000000e+00> : vector<8x32xf32>
    %38 = tpu.matmul %35, %37, %cst_20 {dimension_numbers = #tpu.dot_dimension_numbers<[1], [0], [0], [1], [0, 0, 1, 1], [], []>} : vector<8x32xf32>, vector<32x32xf32>, vector<8x32xf32> -> vector<8x32xf32>
    %c2_21 = arith.constant 2 : index
    %c0_22 = arith.constant 0 : index
    %39 = vector.load %arg3[%c2_21, %c0_22] : memref<5x32xf32, #tpu.memory_space<vmem>>, vector<1x32xf32>
    %40 = vector.broadcast %39 : vector<1x32xf32> to vector<8x32xf32>
    %41 = arith.addf %38, %40 : vector<8x32xf32>
    %cst_23 = arith.constant 0.908999979 : f32
    %42 = vector.broadcast %cst_23 : f32 to vector<8x32xf32>
    %43 = arith.mulf %42, %41 : vector<8x32xf32>
    %44 = arith.negf %41 : vector<8x32xf32>
    %45 = math.exp %44 : vector<8x32xf32>
    %cst_24 = arith.constant 1.000000e+00 : f32
    %46 = vector.broadcast %cst_24 : f32 to vector<8x32xf32>
    %47 = arith.addf %46, %45 : vector<8x32xf32>
    %48 = arith.divf %46, %47 : vector<8x32xf32>
    %49 = arith.mulf %43, %48 : vector<8x32xf32>
    %c3 = arith.constant 3 : index
    %c0_25 = arith.constant 0 : index
    %c0_26 = arith.constant 0 : index
    %50 = vector.load %arg2[%c3, %c0_25, %c0_26] : memref<4x32x32xf32, #tpu.memory_space<vmem>>, vector<1x32x32xf32>
    %51 = vector.shape_cast %50 : vector<1x32x32xf32> to vector<32x32xf32>
    %cst_27 = arith.constant dense<0.000000e+00> : vector<8x32xf32>
    %52 = tpu.matmul %49, %51, %cst_27 {dimension_numbers = #tpu.dot_dimension_numbers<[1], [0], [0], [1], [0, 0, 1, 1], [], []>} : vector<8x32xf32>, vector<32x32xf32>, vector<8x32xf32> -> vector<8x32xf32>
    %c3_28 = arith.constant 3 : index
    %c0_29 = arith.constant 0 : index
    %53 = vector.load %arg3[%c3_28, %c0_29] : memref<5x32xf32, #tpu.memory_space<vmem>>, vector<1x32xf32>
    %54 = vector.broadcast %53 : vector<1x32xf32> to vector<8x32xf32>
    %55 = arith.addf %52, %54 : vector<8x32xf32>
    %56 = vector.extract_strided_slice %55 {offsets = [0, 0], sizes = [8, 16], strides = [1, 1]} : vector<8x32xf32> to vector<8x16xf32>
    %57 = math.tanh %56 : vector<8x16xf32>
    %c0_30 = arith.constant 0 : index
    %c0_31 = arith.constant 0 : index
    %58 = vector.load %arg4[%c0_30, %c0_31] : memref<8x16xf32, #tpu.memory_space<vmem>>, vector<8x16xf32>
    tpu.vector_store %arg4[%c0_30, %c0_31], %57 {strides = array<i32>} : memref<8x16xf32, #tpu.memory_space<vmem>>, vector<8x16xf32>,
    return
  }
}

</mosaic_0001>

<llo_original>
// kernel: discriminator_forward.1
$region0: #{discriminator_forward.1}
  #allocation0 [shape = 'u32[]', space=smem, size = 0x4, offset = 0x4, fixed_abs, tag = 'smem constant byte address 0x4 - core index']
  #allocation1 [shape = 'u32[144,128]{1,0:T(1,128)}', space=vmem, size = 0x12000, scoped, tag = 'internal scratch']
  #allocation2 [shape = 'f32[1,1]{1,0:T(1,128)S(6)}', space=smem, size = 0x200, scoped, tag = 'scoped memory for discriminator_forward.1']
  %s0 = inlined_call_operand.<no memory space> [shape: f32[1,1], index: 0, kind: input, shape index: {}]
  %s1 = inlined_call_operand.vmem [shape: f32[8,4], index: 1, kind: input, shape index: {}]
  %s2 = inlined_call_operand.hbm [shape: f32[4,32,32], index: 2, kind: input, shape index: {}]
  %s3 = inlined_call_operand.vmem [shape: f32[5,32], index: 3, kind: input, shape index: {}]
  %s4 = inlined_call_operand.vmem [shape: f32[8,16], index: 4, kind: output, shape index: {}]
  %s5 = sld [smem:[#allocation0]]
  $region30: #{discriminator_forward.1} parent=0
    _
  %s7 = ssub.s32 1, %s5
  %s8 = scalar_select 0, %s7, %s5
  %9 = sst [smem:[#allocation2]] %s0
  $region1: #{discriminator_forward.1} parent=0
    #allocation3 [shape = 'u8[65536]{0}', space=vmem, size = 0x10000, scoped, tag = 'input window, operand 2, single buffered']
    #allocation4 [shape = 's32[1]{0}', space=sflag, size = 0x4, scoped, tag = 'scoped memory for discriminator_forward.1']
    %10 = vsyncpa [#allocation4], 0
    // Predicated region
    $region2: #{discriminator_forward.1} parent=1 // pred_check
      _
    $region3: #{discriminator_forward.1} parent=1 // pred_check_branch
      %12 = sbr.rel (0) target = $region5
    $region4: #{discriminator_forward.1} parent=1 // pred_region
      _
    $region5: #{discriminator_forward.1} parent=1 // pred_fallthru
      _
    // Predicated region
    $region6: #{discriminator_forward.1} parent=1 // pred_check
      _
    $region7: #{discriminator_forward.1} parent=1 // pred_check_branch
      %14 = sbr.rel (0) target = $region9
    $region8: #{discriminator_forward.1} parent=1 // pred_region
      _
    $region9: #{discriminator_forward.1} parent=1 // pred_fallthru
      _
    // Predicated region
    $region10: #{discriminator_forward.1} parent=1 // pred_check
      _
    $region11: #{discriminator_forward.1} parent=1 // pred_check_branch
      %16 = sbr.rel (0) target = $region13
    $region12: #{discriminator_forward.1} parent=1 // pred_region
      %s18 = ssub.s32 2048, 2048
      %19 = vsyncadd [#allocation4], %s18
      %s20 = sshll.u32 [#allocation3], 4
      %s21 = int_to_ptr.vmem [resolvable:$true] %s20
      %26 = dma.hbm_to_vmem [thread:$0]  %s2, 2048, %s21, [#allocation4], 128, 128, 8
    $region13: #{discriminator_forward.1} parent=1 // pred_fallthru
      _
    // Predicated region
    $region14: #{discriminator_forward.1} parent=1 // pred_check
      _
    $region15: #{discriminator_forward.1} parent=1 // pred_check_branch
      %28 = sbr.rel (0) target = $region17
    $region16: #{discriminator_forward.1} parent=1 // pred_region
      _
    $region17: #{discriminator_forward.1} parent=1 // pred_fallthru
      _
    // Predicated region
    $region18: #{discriminator_forward.1} parent=1 // pred_check
      _
    $region19: #{discriminator_forward.1} parent=1 // pred_check_branch
      %30 = sbr.rel (0) target = $region21
    $region20: #{discriminator_forward.1} parent=1 // pred_region
      %31 = dma.done [#allocation4], 2048
    $region21: #{discriminator_forward.1} parent=1 // pred_fallthru
      _
    %s32 = sld [smem:[#allocation2]]
    %v33 = vld [vmem:[%s1] sm:$0xff]
    %v34 = vld [vmem:[#allocation3] sm:$0xff]
    %v35 = vld [vmem:[%s3] sm:$0x1]
    %v36 = vlaneseq
    %v37 = vshrl.u32 %v36, 7
    %v38 = vsub.s32 0, %v37
    %v39 = vrot.slane %v35, %v38
    %vm40 = vcmask 31744
    %v42 = vsel %vm40, %v33, 0
    %vm44 = vcmask 1043456
    %v46 = vsel %vm44, %v34, 0
    %48 = vmatprep.subr.mxu0 0.0
    %49 = vmatpush1.msra.mxu0 %v46
    %50 = vmatprep.subr.mxu0 0.0
    %51 = vmatpush1.msra.mxu0 0.0
    %52 = vmatprep.subr.mxu0 0.0
    %53 = vmatpush1.msra.mxu0 0.0
    %54 = vmatprep.subr.mxu0 0.0
    %55 = vmatpush1.msra.mxu0 0.0
    %56 = vmatprep.subr.mxu0 0.0
    %57 = vmatpush1.msra.mxu0 0.0
    %58 = vmatprep.subr.mxu0 0.0
    %59 = vmatpush1.msra.mxu0 0.0
    %60 = vmatprep.subr.mxu0 0.0
    %61 = vmatpush1.msra.mxu0 0.0
    %62 = vmatprep.subr.mxu0 0.0
    %63 = vmatpush1.msra.mxu0 0.0
    %64 = vmatprep.subr.mxu0 0.0
    %65 = vmatpush1.msra.mxu0 0.0
    %66 = vmatprep.subr.mxu0 0.0
    %67 = vmatpush1.msra.mxu0 0.0
    %68 = vmatprep.subr.mxu0 0.0
    %69 = vmatpush1.msra.mxu0 0.0
    %70 = vmatprep.subr.mxu0 0.0
    %71 = vmatpush1.msra.mxu0 0.0
    %72 = vmatprep.subr.mxu0 0.0
    %73 = vmatpush1.msra.mxu0 0.0
    %74 = vmatprep.subr.mxu0 0.0
    %75 = vmatpush1.msra.mxu0 0.0
    %76 = vmatprep.subr.mxu0 0.0
    %77 = vmatpush1.msra.mxu0 0.0
    %78 = vmatprep.subr.mxu0 0.0
    %79 = vmatpush1.msra.mxu0 0.0
    %80 = vmatprep.subr.mxu0 0.0
    %81 = vmatpush1.msra.mxu0 0.0
    %82 = vmatprep.subr.mxu0 0.0
    %83 = vmatpush1.msra.mxu0 0.0
    %84 = vmatprep.subr.mxu0 0.0
    %85 = vmatpush1.msra.mxu0 0.0
    %86 = vmatprep.subr.mxu0 0.0
    %87 = vmatpush1.msra.mxu0 0.0
    %88 = vmatprep.subr.mxu0 0.0
    %89 = vmatpush1.msra.mxu0 0.0
    %90 = vmatprep.subr.mxu0 0.0
    %91 = vmatpush1.msra.mxu0 0.0
    %92 = vmatprep.subr.mxu0 0.0
    %93 = vmatpush1.msra.mxu0 0.0
    %94 = vmatprep.subr.mxu0 0.0
    %95 = vmatpush1.msra.mxu0 0.0
    %96 = vmatprep.subr.mxu0 0.0
    %97 = vmatpush1.msra.mxu0 0.0
    %98 = vmatprep.subr.mxu0 0.0
    %99 = vmatpush1.msra.mxu0 0.0
    %100 = vmatprep.subr.mxu0 0.0
    %101 = vmatpush1.msra.mxu0 0.0
    %102 = vmatprep.subr.mxu0 0.0
    %103 = vmatpush1.msra.mxu0 0.0
    %104 = vmatprep.subr.mxu0 0.0
    %105 = vmatpush1.msra.mxu0 0.0
    %106 = vmatprep.subr.mxu0 0.0
    %107 = vmatpush1.msra.mxu0 0.0
    %108 = vmatprep.subr.mxu0 0.0
    %109 = vmatpush1.msra.mxu0 0.0
    %110 = vmatprep.subr.mxu0 0.0
    %111 = vmatpush1.msra.mxu0 0.0
    %112 = vmatprep.mubr.f32.mxu0 0.0
    %113 = vmatmul.mubr.f32.gmra.mrb[0].mxu0 %v42
    %v114 = vpop.f32.mrb[0].mxu0
    %v115 = vadd.f32 %v39, %v114
    %v116 = vpop.f32.mrb[0].mxu0
    %117 = vdwg.mxu0
    %v118 = vld [vmem:[%s3 + $0x4] sm:$0x1]
    %v119 = vstv %s32
    %v120 = vmul.f32 %v119, %v118
    %v121 = vlaneseq
    %v122 = vshrl.u32 %v121, 7
    %v123 = vsub.s32 0, %v122
    %v124 = vrot.slane %v120, %v123
    %v125 = vadd.f32 %v115, %v124
    %v126 = vmul.f32 %v125, 0.909
    %v127 = vxor.u32 %v125, 2147483648
    %v128 = vmul.f32 %v127, 1.442695
    %v129 = vpow.pop %v128
    %v130 = vadd.f32 %v129, 1.0
    %v131 = vrcp.pop %v130
    %v132 = vmul.f32 1.0, %v131
    %v133 = vmul.f32 %v126, %v132
    %s134 = scalar_lea.vmem [#allocation3], 32
    %v135 = vld [vmem:[%s134] sm:$0xff]
    %v136 = vld [vmem:[%s134 + $0x8] sm:$0xff]
    %v137 = vld [vmem:[%s134 + $0x10] sm:$0xff]
    %v138 = vld [vmem:[%s134 + $0x18] sm:$0xff]
    %v139 = vld [vmem:[%s3 + $0x1] sm:$0x1]
    %v140 = vlaneseq
    %v141 = vshrl.u32 %v140, 7
    %v142 = vsub.s32 0, %v141
    %v143 = vrot.slane %v139, %v142
    %vm144 = vcmask 261120
    %v146 = vsel %vm144, %v133, 0
    %148 = vmatprep.subr.mxu0 0.0
    %149 = vmatpush1.msra.mxu0 %v135
    %150 = vmatprep.subr.mxu0 0.0
    %151 = vmatpush1.msra.mxu0 %v136
    %152 = vmatprep.subr.mxu0 0.0
    %153 = vmatpush1.msra.mxu0 %v137
    %154 = vmatprep.subr.mxu0 0.0
    %155 = vmatpush1.msra.mxu0 %v138
    %156 = vmatprep.subr.mxu0 0.0
    %157 = vmatpush1.msra.mxu0 0.0
    %158 = vmatprep.subr.mxu0 0.0
    %159 = vmatpush1.msra.mxu0 0.0
    %160 = vmatprep.subr.mxu0 0.0
    %161 = vmatpush1.msra.mxu0 0.0
    %162 = vmatprep.subr.mxu0 0.0
    %163 = vmatpush1.msra.mxu0 0.0
    %164 = vmatprep.subr.mxu0 0.0
    %165 = vmatpush1.msra.mxu0 0.0
    %166 = vmatprep.subr.mxu0 0.0
    %167 = vmatpush1.msra.mxu0 0.0
    %168 = vmatprep.subr.mxu0 0.0
    %169 = vmatpush1.msra.mxu0 0.0
    %170 = vmatprep.subr.mxu0 0.0
    %171 = vmatpush1.msra.mxu0 0.0
    %172 = vmatprep.subr.mxu0 0.0
    %173 = vmatpush1.msra.mxu0 0.0
    %174 = vmatprep.subr.mxu0 0.0
    %175 = vmatpush1.msra.mxu0 0.0
    %176 = vmatprep.subr.mxu0 0.0
    %177 = vmatpush1.msra.mxu0 0.0
    %178 = vmatprep.subr.mxu0 0.0
    %179 = vmatpush1.msra.mxu0 0.0
    %180 = vmatprep.subr.mxu0 0.0
    %181 = vmatpush1.msra.mxu0 0.0
    %182 = vmatprep.subr.mxu0 0.0
    %183 = vmatpush1.msra.mxu0 0.0
    %184 = vmatprep.subr.mxu0 0.0
    %185 = vmatpush1.msra.mxu0 0.0
    %186 = vmatprep.subr.mxu0 0.0
    %187 = vmatpush1.msra.mxu0 0.0
    %188 = vmatprep.subr.mxu0 0.0
    %189 = vmatpush1.msra.mxu0 0.0
    %190 = vmatprep.subr.mxu0 0.0
    %191 = vmatpush1.msra.mxu0 0.0
    %192 = vmatprep.subr.mxu0 0.0
    %193 = vmatpush1.msra.mxu0 0.0
    %194 = vmatprep.subr.mxu0 0.0
    %195 = vmatpush1.msra.mxu0 0.0
    %196 = vmatprep.subr.mxu0 0.0
    %197 = vmatpush1.msra.mxu0 0.0
    %198 = vmatprep.subr.mxu0 0.0
    %199 = vmatpush1.msra.mxu0 0.0
    %200 = vmatprep.subr.mxu0 0.0
    %201 = vmatpush1.msra.mxu0 0.0
    %202 = vmatprep.subr.mxu0 0.0
    %203 = vmatpush1.msra.mxu0 0.0
    %204 = vmatprep.subr.mxu0 0.0
    %205 = vmatpush1.msra.mxu0 0.0
    %206 = vmatprep.subr.mxu0 0.0
    %207 = vmatpush1.msra.mxu0 0.0
    %208 = vmatprep.subr.mxu0 0.0
    %209 = vmatpush1.msra.mxu0 0.0
    %210 = vmatprep.subr.mxu0 0.0
    %211 = vmatpush1.msra.mxu0 0.0
    %212 = vmatprep.mubr.f32.mxu0 0.0
    %213 = vmatmul.mubr.f32.gmra.mrb[0].mxu0 %v146
    %v214 = vpop.f32.mrb[0].mxu0
    %v215 = vadd.f32 %v143, %v214
    %v216 = vpop.f32.mrb[0].mxu0
    %217 = vdwg.mxu0
    %v218 = vmul.f32 %v215, 0.909
    %v219 = vxor.u32 %v215, 2147483648
    %v220 = vmul.f32 %v219, 1.442695
    %v221 = vpow.pop %v220
    %v222 = vadd.f32 %v221, 1.0
    %v223 = vrcp.pop %v222
    %v224 = vmul.f32 1.0, %v223
    %v225 = vmul.f32 %v218, %v224
    %s226 = scalar_lea.vmem [#allocation3], 64
    %v227 = vld [vmem:[%s226] sm:$0xff]
    %v228 = vld [vmem:[%s226 + $0x8] sm:$0xff]
    %v229 = vld [vmem:[%s226 + $0x10] sm:$0xff]
    %v230 = vld [vmem:[%s226 + $0x18] sm:$0xff]
    %v231 = vld [vmem:[%s3 + $0x2] sm:$0x1]
    %v232 = vlaneseq
    %v233 = vshrl.u32 %v232, 7
    %v234 = vsub.s32 0, %v233
    %v235 = vrot.slane %v231, %v234
    %v237 = vsel %vm144, %v225, 0
    %239 = vmatprep.subr.mxu0 0.0
    %240 = vmatpush1.msra.mxu0 %v227
    %241 = vmatprep.subr.mxu0 0.0
    %242 = vmatpush1.msra.mxu0 %v228
    %243 = vmatprep.subr.mxu0 0.0
    %244 = vmatpush1.msra.mxu0 %v229
    %245 = vmatprep.subr.mxu0 0.0
    %246 = vmatpush1.msra.mxu0 %v230
    %247 = vmatprep.subr.mxu0 0.0
    %248 = vmatpush1.msra.mxu0 0.0
    %249 = vmatprep.subr.mxu0 0.0
    %250 = vmatpush1.msra.mxu0 0.0
    %251 = vmatprep.subr.mxu0 0.0
    %252 = vmatpush1.msra.mxu0 0.0
    %253 = vmatprep.subr.mxu0 0.0
    %254 = vmatpush1.msra.mxu0 0.0
    %255 = vmatprep.subr.mxu0 0.0
    %256 = vmatpush1.msra.mxu0 0.0
    %257 = vmatprep.subr.mxu0 0.0
    %258 = vmatpush1.msra.mxu0 0.0
    %259 = vmatprep.subr.mxu0 0.0
    %260 = vmatpush1.msra.mxu0 0.0
    %261 = vmatprep.subr.mxu0 0.0
    %262 = vmatpush1.msra.mxu0 0.0
    %263 = vmatprep.subr.mxu0 0.0
    %264 = vmatpush1.msra.mxu0 0.0
    %265 = vmatprep.subr.mxu0 0.0
    %266 = vmatpush1.msra.mxu0 0.0
    %267 = vmatprep.subr.mxu0 0.0
    %268 = vmatpush1.msra.mxu0 0.0
    %269 = vmatprep.subr.mxu0 0.0
    %270 = vmatpush1.msra.mxu0 0.0
    %271 = vmatprep.subr.mxu0 0.0
    %272 = vmatpush1.msra.mxu0 0.0
    %273 = vmatprep.subr.mxu0 0.0
    %274 = vmatpush1.msra.mxu0 0.0
    %275 = vmatprep.subr.mxu0 0.0
    %276 = vmatpush1.msra.mxu0 0.0
    %277 = vmatprep.subr.mxu0 0.0
    %278 = vmatpush1.msra.mxu0 0.0
    %279 = vmatprep.subr.mxu0 0.0
    %280 = vmatpush1.msra.mxu0 0.0
    %281 = vmatprep.subr.mxu0 0.0
    %282 = vmatpush1.msra.mxu0 0.0
    %283 = vmatprep.subr.mxu0 0.0
    %284 = vmatpush1.msra.mxu0 0.0
    %285 = vmatprep.subr.mxu0 0.0
    %286 = vmatpush1.msra.mxu0 0.0
    %287 = vmatprep.subr.mxu0 0.0
    %288 = vmatpush1.msra.mxu0 0.0
    %289 = vmatprep.subr.mxu0 0.0
    %290 = vmatpush1.msra.mxu0 0.0
    %291 = vmatprep.subr.mxu0 0.0
    %292 = vmatpush1.msra.mxu0 0.0
    %293 = vmatprep.subr.mxu0 0.0
    %294 = vmatpush1.msra.mxu0 0.0
    %295 = vmatprep.subr.mxu0 0.0
    %296 = vmatpush1.msra.mxu0 0.0
    %297 = vmatprep.subr.mxu0 0.0
    %298 = vmatpush1.msra.mxu0 0.0
    %299 = vmatprep.subr.mxu0 0.0
    %300 = vmatpush1.msra.mxu0 0.0
    %301 = vmatprep.subr.mxu0 0.0
    %302 = vmatpush1.msra.mxu0 0.0
    %303 = vmatprep.mubr.f32.mxu0 0.0
    %304 = vmatmul.mubr.f32.gmra.mrb[0].mxu0 %v237
    %v305 = vpop.f32.mrb[0].mxu0
    %v306 = vadd.f32 %v235, %v305
    %v307 = vpop.f32.mrb[0].mxu0
    %308 = vdwg.mxu0
    %v309 = vmul.f32 %v306, 0.909
    %v310 = vxor.u32 %v306, 2147483648
    %v311 = vmul.f32 %v310, 1.442695
    %v312 = vpow.pop %v311
    %v313 = vadd.f32 %v312, 1.0
    %v314 = vrcp.pop %v313
    %v315 = vmul.f32 1.0, %v314
    %v316 = vmul.f32 %v309, %v315
    %s317 = scalar_lea.vmem [#allocation3], 96
    %v318 = vld [vmem:[%s317] sm:$0xff]
    %v319 = vld [vmem:[%s317 + $0x8] sm:$0xff]
    %v320 = vld [vmem:[%s317 + $0x10] sm:$0xff]
    %v321 = vld [vmem:[%s317 + $0x18] sm:$0xff]
    %v322 = vld [vmem:[%s3 + $0x3] sm:$0x1]
    %v323 = vlaneseq
    %v324 = vshrl.u32 %v323, 7
    %v325 = vsub.s32 0, %v324
    %v326 = vrot.slane %v322, %v325
    %v328 = vsel %vm144, %v316, 0
    %330 = vmatprep.subr.mxu0 0.0
    %331 = vmatpush1.msra.mxu0 %v318
    %332 = vmatprep.subr.mxu0 0.0
    %333 = vmatpush1.msra.mxu0 %v319
    %334 = vmatprep.subr.mxu0 0.0
    %335 = vmatpush1.msra.mxu0 %v320
    %336 = vmatprep.subr.mxu0 0.0
    %337 = vmatpush1.msra.mxu0 %v321
    %338 = vmatprep.subr.mxu0 0.0
    %339 = vmatpush1.msra.mxu0 0.0
    %340 = vmatprep.subr.mxu0 0.0
    %341 = vmatpush1.msra.mxu0 0.0
    %342 = vmatprep.subr.mxu0 0.0
    %343 = vmatpush1.msra.mxu0 0.0
    %344 = vmatprep.subr.mxu0 0.0
    %345 = vmatpush1.msra.mxu0 0.0
    %346 = vmatprep.subr.mxu0 0.0
    %347 = vmatpush1.msra.mxu0 0.0
    %348 = vmatprep.subr.mxu0 0.0
    %349 = vmatpush1.msra.mxu0 0.0
    %350 = vmatprep.subr.mxu0 0.0
    %351 = vmatpush1.msra.mxu0 0.0
    %352 = vmatprep.subr.mxu0 0.0
    %353 = vmatpush1.msra.mxu0 0.0
    %354 = vmatprep.subr.mxu0 0.0
    %355 = vmatpush1.msra.mxu0 0.0
    %356 = vmatprep.subr.mxu0 0.0
    %357 = vmatpush1.msra.mxu0 0.0
    %358 = vmatprep.subr.mxu0 0.0
    %359 = vmatpush1.msra.mxu0 0.0
    %360 = vmatprep.subr.mxu0 0.0
    %361 = vmatpush1.msra.mxu0 0.0
    %362 = vmatprep.subr.mxu0 0.0
    %363 = vmatpush1.msra.mxu0 0.0
    %364 = vmatprep.subr.mxu0 0.0
    %365 = vmatpush1.msra.mxu0 0.0
    %366 = vmatprep.subr.mxu0 0.0
    %367 = vmatpush1.msra.mxu0 0.0
    %368 = vmatprep.subr.mxu0 0.0
    %369 = vmatpush1.msra.mxu0 0.0
    %370 = vmatprep.subr.mxu0 0.0
    %371 = vmatpush1.msra.mxu0 0.0
    %372 = vmatprep.subr.mxu0 0.0
    %373 = vmatpush1.msra.mxu0 0.0
    %374 = vmatprep.subr.mxu0 0.0
    %375 = vmatpush1.msra.mxu0 0.0
    %376 = vmatprep.subr.mxu0 0.0
    %377 = vmatpush1.msra.mxu0 0.0
    %378 = vmatprep.subr.mxu0 0.0
    %379 = vmatpush1.msra.mxu0 0.0
    %380 = vmatprep.subr.mxu0 0.0
    %381 = vmatpush1.msra.mxu0 0.0
    %382 = vmatprep.subr.mxu0 0.0
    %383 = vmatpush1.msra.mxu0 0.0
    %384 = vmatprep.subr.mxu0 0.0
    %385 = vmatpush1.msra.mxu0 0.0
    %386 = vmatprep.subr.mxu0 0.0
    %387 = vmatpush1.msra.mxu0 0.0
    %388 = vmatprep.subr.mxu0 0.0
    %389 = vmatpush1.msra.mxu0 0.0
    %390 = vmatprep.subr.mxu0 0.0
    %391 = vmatpush1.msra.mxu0 0.0
    %392 = vmatprep.subr.mxu0 0.0
    %393 = vmatpush1.msra.mxu0 0.0
    %394 = vmatprep.mubr.f32.mxu0 0.0
    %395 = vmatmul.mubr.f32.gmra.mrb[0].mxu0 %v328
    %v396 = vpop.f32.mrb[0].mxu0
    %v397 = vadd.f32 %v326, %v396
    %v398 = vpop.f32.mrb[0].mxu0
    %399 = vdwg.mxu0
    %v400 = vtanh.pop %v397
    %vm401 = vcmask 130048
    %402 = vst.msk [vmem:[%s4] sm:$0xff] %vm401, %v400
    // Predicated region
    $region22: #{discriminator_forward.1} parent=1 // pred_check
      _
    $region23: #{discriminator_forward.1} parent=1 // pred_check_branch
      %404 = sbr.rel (0) target = $region25
    $region24: #{discriminator_forward.1} parent=1 // pred_region
      _
    $region25: #{discriminator_forward.1} parent=1 // pred_fallthru
      _
    // Predicated region
    $region26: #{discriminator_forward.1} parent=1 // pred_check
      _
    $region27: #{discriminator_forward.1} parent=1 // pred_check_branch
      %406 = sbr.rel (0) target = $region29
    $region28: #{discriminator_forward.1} parent=1 // pred_region
      _
    $region29: #{discriminator_forward.1} parent=1 // pred_fallthru
      _
    %407 = vsyncpa [#allocation4], 1

</llo_original>
